<compile_context>
chip_gen: v5e
topology: v5e:2x2
jax: 0.10.0
libtpu: 0.0.40
codegen_flags: <defaults>
</compile_context>

<pallas_src>
import numpy as np
import jax
import jax.numpy as jnp
from jax.experimental import pallas as pl
from jax.experimental.pallas import tpu as pltpu


# ------------------------- weight construction (glue) -------------------------

def gating(gate, threshold=0.01):
    left = [i for i in range(gate.shape[0]) if abs(gate[i]) >= threshold]
    if len(left) == 0:
        left = [int(np.argmax(np.abs(gate)))]
    return left


def _weight_norm(weight_v, weight_g):
    # per-output-filter: w[i] = v[i] / ||v[i]|| * g[i]
    out = np.array([weight_v[i] / np.linalg.norm(weight_v[i]) * weight_g[i]
                    for i in range(weight_v.shape[0])])
    return out.astype(np.float32)


def build_output_svd_weights(elem_v, elem_g, rest_v, rest_g):
    """Mirrors OutputSVD.__init__ weight math. Returns (w_element, w_restore)
    as 4D conv weights (Cout, Cin, 1, 1)."""
    cin = gating(elem_g)
    input_dim = elem_v.shape[1]
    output_dim = rest_v.shape[0]
    rank = len(cin)

    def faster_check(m, k, n):
        return m * k + k * n < m * n

    if faster_check(input_dim, rank, output_dim):
        w_elem = _weight_norm(elem_v, elem_g)[cin, :, :, :]          # (rank, Cin, 1, 1)
        w_rest = _weight_norm(rest_v, rest_g)[:, cin, :, :]          # (Cout, rank, 1, 1)
    else:
        # falls back to the original (weight-normed) full-rank pair
        w_elem = _weight_norm(elem_v, elem_g)
        w_rest = _weight_norm(rest_v, rest_g)
    return w_elem, w_rest


# ----------------------------- tiling heuristics -------------------------------

def _vmem_params():
    """(tile budget bytes, vmem_limit_bytes cap) for the current TPU generation."""
    try:
        phys = int(pltpu.get_tpu_info().vmem_capacity_bytes)
    except Exception:  # older jax / CPU interpret: assume the small (v7x) VMEM
        phys = 64 << 20
    if phys >= (96 << 20):          # v5e / v6e: 128 MiB physical VMEM
        return 88 << 20, 100 << 20
    return 24 << 20, 52 << 20       # v7x: 64 MiB physical, leave headroom


def _choose_tile_hw(hw, cin, cout, itemsize, budget_bytes, cap=8192):
    """Lane-tile for the stride-1 path.  Prefer a full-extent block (exempt from
    the 128-divisibility rule, no masked tail); else the biggest 128-multiple
    whose double-buffered in+out blocks fit the budget."""
    if hw <= cap and 2 * (cin + cout) * hw * itemsize <= budget_bytes:
        return hw
    t = max(128, min(cap, (hw // 128) * 128))
    while t > 128 and 2 * (cin + cout) * t * itemsize > budget_bytes:
        t -= 128
    return t


def _choose_bn(n, n_hw, per_image_bytes, budget_bytes, target_bytes=512 << 10):
    """Images per grid step: amortize per-step overhead (~0.35us) by moving
    >=0.5 MiB per step, but never drop below 2 parallel steps (v7x megacore)
    and never blow the double-buffered VMEM budget."""
    if n == 1 or per_image_bytes >= target_bytes:
        return 1
    best = 1
    for d in range(2, n + 1):
        if n % d:
            continue
        if 2 * d * per_image_bytes > budget_bytes:
            break
        if (n // d) * n_hw < 2 and n * n_hw >= 2:
            break
        best = d
        if d * per_image_bytes >= target_bytes:
            break
    return best


def _choose_rows_per_step(h, h_out, s, cin, cout, w, w_out, itemsize, budget):
    """Output rows per grid step for the strided path.  Prefer full-extent
    blocks (input block == full H, output block == full H_out); else a multiple
    of 8 so both blocks stay (8,128)-compliant."""
    per_row = (cin * s * w + cout * w_out) * itemsize
    if h % s == 0 and h_out <= 32 and 2 * h_out * per_row <= budget:
        return h_out
    rg = max(1, budget // (2 * per_row))
    rg = min(rg, 32, h_out)
    rg = max(8, (rg // 8) * 8)
    return rg


# ------------------------------ Pallas kernels ---------------------------------

def _make_pointwise_kernel(fold, bn):
    """stride == 1: per image y = W @ x  with x: (Cin, t_hw), channels on
    sublanes, spatial on lanes.  `bn` images per grid step (static unroll)."""
    if fold:
        def kernel(x_ref, w_ref, o_ref):
            w = w_ref[...]
            for i in range(bn):
                o_ref[i] = jnp.dot(
                    w, x_ref[i], preferred_element_type=jnp.float32
                ).astype(o_ref.dtype)
        return kernel

    def kernel(x_ref, w1_ref, w2_ref, o_ref):
        w1 = w1_ref[...]
        w2 = w2_ref[...].astype(jnp.float32)     # keep the intermediate in f32
        for i in range(bn):
            h = jnp.dot(w1, x_ref[i], preferred_element_type=jnp.float32)
            o_ref[i] = jnp.dot(
                w2, h, preferred_element_type=jnp.float32
            ).astype(o_ref.dtype)
    return kernel


def _make_strided_kernel(fold, rg, s):
    """stride > 1: x_ref is (Cin, rg*s-or-H, W); output rows are computed one by
    one (static unroll), column subsampling done with a 0/1 selection matmul."""
    if fold:
        def kernel(x_ref, w_ref, wsel_ref, o_ref):
            w = w_ref[...]
            wsel = wsel_ref[...]
            for l in range(rg):
                row = x_ref[:, l * s, :]                                  # (Cin, W)
                y = jnp.dot(w, row, preferred_element_type=jnp.float32)   # (Cout, W)
                y = jnp.dot(y, wsel, preferred_element_type=jnp.float32)  # (Cout, W_out)
                o_ref[:, l, :] = y.astype(o_ref.dtype)
        return kernel

    def kernel(x_ref, w1_ref, w2_ref, wsel_ref, o_ref):
        w1 = w1_ref[...]
        w2 = w2_ref[...].astype(jnp.float32)
        wsel = wsel_ref[...]
        for l in range(rg):
            row = x_ref[:, l * s, :]                                      # (Cin, W)
            h = jnp.dot(w1, row, preferred_element_type=jnp.float32)      # (rank, W)
            h = jnp.dot(h, wsel, preferred_element_type=jnp.float32)      # (rank, W_out)
            o_ref[:, l, :] = jnp.dot(
                w2, h, preferred_element_type=jnp.float32
            ).astype(o_ref.dtype)
    return kernel


# ------------------------------- forward paths ---------------------------------

def _forward_stride1(x, w1, w2, fold, budget, vmem_cap):
    N, Cin, H, W = x.shape
    rank, Cout = w1.shape[0], w2.shape[0]
    HW = H * W
    itemsize = jnp.dtype(x.dtype).itemsize
    x3d = x.reshape(N, Cin, HW)                  # free reshape, native NCHW layout

    t_hw = _choose_tile_hw(HW, Cin, Cout, itemsize, budget)
    n_hw = pl.cdiv(HW, t_hw)
    per_image = (Cin + Cout) * t_hw * itemsize
    bn = _choose_bn(N, n_hw, per_image, budget)
    # v7x megacore: make sure both TensorCores get at least one step when possible
    if (N // bn) * n_hw < 2 and t_hw == HW and HW % 256 == 0:
        t_hw = HW // 2
        n_hw = 2
    grid = (N // bn, n_hw)

    x_spec = pl.BlockSpec((bn, Cin, t_hw), lambda b, j: (b, 0, j))
    o_spec = pl.BlockSpec((bn, Cout, t_hw), lambda b, j: (b, 0, j))

    if fold:
        wf = jnp.dot(w2.astype(jnp.float32), w1.astype(jnp.float32))   # (Cout, Cin)
        kernel = _make_pointwise_kernel(True, bn)
        in_specs = [x_spec, pl.BlockSpec((Cout, Cin), lambda b, j: (0, 0))]
        args = (x3d, wf)
        flops = 2 * N * HW * Cin * Cout
        w_bytes = Cout * Cin * 4
    else:
        kernel = _make_pointwise_kernel(False, bn)
        in_specs = [x_spec,
                    pl.BlockSpec((rank, Cin), lambda b, j: (0, 0)),
                    pl.BlockSpec((Cout, rank), lambda b, j: (0, 0))]
        args = (x3d, w1, w2)
        flops = 2 * N * HW * (Cin * rank + rank * Cout)
        w_bytes = (rank * Cin + Cout * rank) * itemsize

    block_bytes = bn * (Cin + Cout) * t_hw * itemsize
    vmem_limit = int(min(max(2 * (block_bytes + w_bytes) + (8 << 20), 32 << 20),
                         vmem_cap))

    cost = pl.CostEstimate(
        flops=flops, transcendentals=0,
        bytes_accessed=N * HW * (Cin + Cout) * itemsize + w_bytes)

    out = pl.pallas_call(
        kernel,
        out_shape=jax.ShapeDtypeStruct((N, Cout, HW), x.dtype),
        grid_spec=pltpu.PrefetchScalarGridSpec(
            num_scalar_prefetch=0, grid=grid,
            in_specs=in_specs, out_specs=o_spec),
        compiler_params=pltpu.CompilerParams(
            dimension_semantics=("parallel", "parallel"),
            vmem_limit_bytes=vmem_limit),
        cost_estimate=cost,
    )(*args)
    return out.reshape(N, Cout, H, W)


def _forward_strided(x, w1, w2, fold, s, budget, vmem_cap):
    """stride > 1 without materializing x[:, :, ::s, ::s] in HBM: the index_map
    selects the input-row window for each output-row block, rows are subsampled
    in-kernel by static indexing, columns by a 0/1 selection matmul."""
    N, Cin, H, W = x.shape
    rank, Cout = w1.shape[0], w2.shape[0]
    H_out, W_out = -(-H // s), -(-W // s)
    itemsize = jnp.dtype(x.dtype).itemsize

    rg = _choose_rows_per_step(H, H_out, s, Cin, Cout, W, W_out, itemsize, budget)
    n_hb = pl.cdiv(H_out, rg)
    bh_in = H if (rg == H_out and H % s == 0) else rg * s

    # column-subsampling selection matrix: picks every s-th column on the MXU
    wsel_np = np.zeros((W, W_out), np.float32)
    wsel_np[np.arange(W_out) * s, np.arange(W_out)] = 1.0
    wsel = jnp.asarray(wsel_np)

    x_spec = pl.BlockSpec((None, Cin, bh_in, W), lambda n, j: (n, 0, j, 0))
    o_spec = pl.BlockSpec((None, Cout, rg, W_out), lambda n, j: (n, 0, j, 0))

    if fold:
        wf = jnp.dot(w2.astype(jnp.float32), w1.astype(jnp.float32))   # (Cout, Cin)
        kernel = _make_strided_kernel(True, rg, s)
        in_specs = [x_spec,
                    pl.BlockSpec((Cout, Cin), lambda n, j: (0, 0)),
                    pl.BlockSpec((W, W_out), lambda n, j: (0, 0))]
        args = (x, wf, wsel)
        flops = 2 * N * H_out * (W * Cin * Cout + Cout * W * W_out)
        w_bytes = (Cout * Cin + W * W_out) * 4
    else:
        kernel = _make_strided_kernel(False, rg, s)
        in_specs = [x_spec,
                    pl.BlockSpec((rank, Cin), lambda n, j: (0, 0)),
                    pl.BlockSpec((Cout, rank), lambda n, j: (0, 0)),
                    pl.BlockSpec((W, W_out), lambda n, j: (0, 0))]
        args = (x, w1, w2, wsel)
        flops = 2 * N * H_out * (W * Cin * rank + rank * W * W_out + Cout * rank * W_out)
        w_bytes = (rank * Cin + Cout * rank) * itemsize + W * W_out * 4

    block_bytes = (Cin * bh_in * W + Cout * rg * W_out) * itemsize
    vmem_limit = int(min(max(2 * (block_bytes + w_bytes) + (8 << 20), 32 << 20),
                         vmem_cap))

    cost = pl.CostEstimate(
        flops=flops, transcendentals=0,
        bytes_accessed=N * (Cin * min(n_hb * bh_in, H) * W
                            + Cout * H_out * W_out) * itemsize + w_bytes)

    return pl.pallas_call(
        kernel,
        out_shape=jax.ShapeDtypeStruct((N, Cout, H_out, W_out), x.dtype),
        grid_spec=pltpu.PrefetchScalarGridSpec(
            num_scalar_prefetch=0, grid=(N, n_hb),
            in_specs=in_specs, out_specs=o_spec),
        compiler_params=pltpu.CompilerParams(
            dimension_semantics=("parallel", "parallel"),
            vmem_limit_bytes=vmem_limit),
        cost_estimate=cost,
    )(*args)


# ------------------------------- public wrapper --------------------------------

def output_svd_forward(x_nchw, w_element, w_restore, stride=1, *,
                       bypass_bytes=256 << 10, fold_weight_bytes=2 << 20):
    """x_nchw: (N, Cin, H, W); w_element: (rank, Cin, 1, 1); w_restore: (Cout, rank, 1, 1)."""
    N, Cin, H, W = x_nchw.shape
    rank = w_element.shape[0]
    Cout = w_restore.shape[0]
    s = int(stride)
    H_out, W_out = -(-H // s), -(-W // s)
    itemsize = jnp.dtype(x_nchw.dtype).itemsize

    w1 = w_element[:, :, 0, 0]          # (rank, Cin)
    w2 = w_restore[:, :, 0, 0]          # (Cout, rank)

    # Aggressive fold: at these arithmetic intensities the kernel is HBM-bound,
    # so fold whenever the folded (Cout, Cin) weight is small, not only when it
    # has fewer flops than the pair.
    fold = ((Cin * rank + rank * Cout) >= (Cin * Cout)) or \
           (Cin * Cout * 4 <= fold_weight_bytes)

    # Small-problem bypass: pallas_call dispatch + per-step overhead would
    # dominate sub-µs amounts of work.
    approx_bytes = N * (Cin * H * W + Cout * H_out * W_out) * itemsize
    if approx_bytes < bypass_bytes:
        xs = x_nchw[:, :, ::s, ::s] if s > 1 else x_nchw
        wf = jnp.dot(w2.astype(jnp.float32), w1.astype(jnp.float32))
        y = jnp.einsum("oc,nchw->nohw", wf, xs.astype(jnp.float32))
        return y.astype(x_nchw.dtype)

    budget, vmem_cap = _vmem_params()
    if s == 1:
        return _forward_stride1(x_nchw, w1, w2, fold, budget, vmem_cap)
    return _forward_strided(x_nchw, w1, w2, fold, s, budget, vmem_cap)
    # TODO(synk): for very small strided images a multi-row-per-step variant of
    # the strided kernel would amortize per-step overhead further.


# ---------------------------------- main ----------------------------------------

if __name__ == "__main__":
    # Synthetic weight-norm parameters (what net.element / net.restore would hold).
    # Shapes chosen so faster_check(input_dim, rank, output_dim) is True.
    input_dim, full_rank, output_dim = 32, 16, 32

    key = jax.random.PRNGKey(0)
    k1, k2, *xkeys = jax.random.split(key, 10)

    elem_v = np.asarray(jax.random.normal(k1, (full_rank, input_dim, 1, 1)),
                        dtype=np.float32)
    # gates: half above threshold, half below -> rank = 8
    elem_g = np.asarray([0.5 if i % 2 == 0 else 1e-4 for i in range(full_rank)],
                        dtype=np.float32)
    rest_v = np.asarray(jax.random.normal(k2, (output_dim, full_rank, 1, 1)),
                        dtype=np.float32)
    rest_g = np.ones((output_dim,), dtype=np.float32)

    w_element, w_restore = build_output_svd_weights(elem_v, elem_g, rest_v, rest_g)
    w_element = jnp.asarray(w_element)
    w_restore = jnp.asarray(w_restore)

    def reference(x, stride):
        # spec: two chained 1x1 convs (strided conv with k=1 == subsample input)
        if stride > 1:
            x = x[:, :, ::stride, ::stride]
        h = jnp.einsum("nchw,rc->nrhw", x.astype(jnp.float32),
                       w_element[:, :, 0, 0].astype(jnp.float32))
        y = jnp.einsum("nrhw,or->nohw", h,
                       w_restore[:, :, 0, 0].astype(jnp.float32))
        return y

    cases = [
        # (shape, stride, kwargs)
        ((2, 32, 48, 48), 1, {}),                          # full-extent lane block, folded GEMM
        ((2, 32, 96, 96), 1, {}),                          # HW > cap: 8192-lane tiles + ragged tail
        ((2, 32, 32, 32), 1, dict(fold_weight_bytes=0)),   # two-matmul (pair) kernel path
        ((4, 32, 24, 24), 1, {}),                          # batch-blocked (bn > 1) path
        ((2, 32, 32, 32), 2, {}),                          # strided kernel, folded, full-extent blocks
        ((2, 32, 40, 40), 2, dict(fold_weight_bytes=0)),   # strided kernel, pair path
        ((2, 32, 14, 14), 2, {}),                          # small-problem bypass (pure JAX)
    ]
    for i, (shape, stride, kw) in enumerate(cases):
        x = jax.random.normal(xkeys[i], shape, dtype=jnp.float32)
        y = jax.block_until_ready(
            output_svd_forward(x, w_element, w_restore, stride=stride, **kw))
        y_ref = reference(x, stride)
        assert y.shape == y_ref.shape, (y.shape, y_ref.shape)
        np.testing.assert_allclose(np.asarray(y), np.asarray(y_ref),
                                   rtol=1e-4, atol=1e-5)

    print("KERNEL_OK")
</pallas_src>

<mosaic_0001>
module attributes {stable_mosaic.version = 11 : i64} {
  func.func @kernel(%arg0: i32, %arg1: i32, %arg2: memref<1x32x2304xf32, #tpu.memory_space<vmem>>, %arg3: memref<32x32xf32, #tpu.memory_space<vmem>>, %arg4: memref<1x32x2304xf32, #tpu.memory_space<vmem>>) attributes {dimension_semantics = [#tpu.dimension_semantics<parallel>, #tpu.dimension_semantics<parallel>], iteration_bounds = array<i64: 2, 1>, scalar_prefetch = 0 : i64, scratch_operands = 0 : i64, tpu.core_type = #tpu.core_type<tc>, window_params = [{transform_indices = @transform_0, window_bounds = array<i64: 1, 32, 2304>}, {pipeline_mode = #tpu.pipeline_mode<synchronous>, transform_indices = @transform_1, window_bounds = array<i64: 32, 32>}, {transform_indices = @transform_2, window_bounds = array<i64: 1, 32, 2304>}]} {
    %c0 = arith.constant 0 : index
    %c0_0 = arith.constant 0 : index
    %0 = vector.load %arg3[%c0, %c0_0] : memref<32x32xf32, #tpu.memory_space<vmem>>, vector<32x32xf32>
    %c0_1 = arith.constant 0 : index
    %c0_2 = arith.constant 0 : index
    %c0_3 = arith.constant 0 : index
    %1 = vector.load %arg2[%c0_1, %c0_2, %c0_3] : memref<1x32x2304xf32, #tpu.memory_space<vmem>>, vector<1x32x2304xf32>
    %2 = vector.shape_cast %1 : vector<1x32x2304xf32> to vector<32x2304xf32>
    %cst = arith.constant dense<0.000000e+00> : vector<32x2304xf32>
    %3 = tpu.matmul %0, %2, %cst {dimension_numbers = #tpu.dot_dimension_numbers<[1], [0], [0], [1], [0, 0, 1, 1], [], []>} : vector<32x32xf32>, vector<32x2304xf32>, vector<32x2304xf32> -> vector<32x2304xf32>
    %c0_4 = arith.constant 0 : index
    %c0_5 = arith.constant 0 : index
    %c0_6 = arith.constant 0 : index
    %4 = vector.load %arg4[%c0_4, %c0_5, %c0_6] : memref<1x32x2304xf32, #tpu.memory_space<vmem>>, vector<1x32x2304xf32>
    %5 = vector.shape_cast %4 : vector<1x32x2304xf32> to vector<32x2304xf32>
    %6 = vector.shape_cast %3 : vector<32x2304xf32> to vector<1x32x2304xf32>
    tpu.vector_store %arg4[%c0_4, %c0_5, %c0_6], %6 {strides = array<i32>} : memref<1x32x2304xf32, #tpu.memory_space<vmem>>, vector<1x32x2304xf32>,
    return
  }
  func.func @transform_0(%arg0: i32, %arg1: i32) -> (i32, i32, i32) {
    %c0_i32 = arith.constant 0 : i32
    %c0_i32_0 = arith.constant 0 : i32
    return %arg0, %c0_i32, %arg1 : i32, i32, i32
  }
  func.func @transform_1(%arg0: i32, %arg1: i32) -> (i32, i32) {
    %c0_i32 = arith.constant 0 : i32
    %c0_i32_0 = arith.constant 0 : i32
    %c0_i32_1 = arith.constant 0 : i32
    return %c0_i32, %c0_i32_0 : i32, i32
  }
  func.func @transform_2(%arg0: i32, %arg1: i32) -> (i32, i32, i32) {
    %c0_i32 = arith.constant 0 : i32
    %c0_i32_0 = arith.constant 0 : i32
    return %arg0, %c0_i32, %arg1 : i32, i32, i32
  }
}

</mosaic_0001>

<llo_original>
// kernel: tpu_custom_call.1
$region0: #{tpu_custom_call.1}
  #allocation0 [shape = 'u32[]', space=smem, size = 0x4, offset = 0x4, fixed_abs, tag = 'smem constant byte address 0x4 - core index']
  #allocation1 [shape = 'u32[72,128]{1,0:T(1,128)}', space=vmem, size = 0x9000, scoped, tag = 'internal scratch']
  %s0 = inlined_call_operand.hbm [shape: f32[2,32,2304], index: 0, kind: input, shape index: {}]
  %s1 = inlined_call_operand.hbm [shape: f32[32,32], index: 1, kind: input, shape index: {}]
  %s2 = inlined_call_operand.hbm [shape: f32[2,32,2304], index: 2, kind: output, shape index: {}]
  %s3 = sld [smem:[#allocation0]]
  $region49: #{tpu_custom_call.1} parent=0
    _
  %s5 = ssub.s32 1, %s3
  %s6 = scalar_select 0, %s5, %s3
  $region1: #{tpu_custom_call.1} parent=0
    #allocation2 [shape = 'u8[589824]{0}', space=vmem, size = 0x90000, scoped, tag = 'input window, operand 0']
    #allocation3 [shape = 's32[2]{0}', space=sflag, size = 0x8, scoped, tag = 'scoped memory for tpu_custom_call.1']
    #allocation4 [shape = 's32[2]{0}', space=sflag, size = 0x8, scoped, tag = 'scoped memory for tpu_custom_call.1']
    #allocation5 [shape = 'u8[16384]{0}', space=vmem, size = 0x4000, scoped, tag = 'input window, operand 1, single buffered']
    #allocation6 [shape = 's32[1]{0}', space=sflag, size = 0x4, scoped, tag = 'scoped memory for tpu_custom_call.1']
    #allocation7 [shape = 'u8[589824]{0}', space=vmem, size = 0x90000, scoped, tag = 'output window, operand 0']
    %7 = vsyncpa [#allocation3], 0
    %s8 = scalar_lea.sflag [#allocation3], 1
    %9 = vsyncpa %s8, 0
    %10 = vsyncpa [#allocation6], 0
    %11 = vsyncpa [#allocation4], 0
    %s12 = scalar_lea.sflag [#allocation4], 1
    %13 = vsyncpa %s12, 0
    loop: start=0, step=1, limit=4
    $region2: #{tpu_custom_call.1} parent=1 // loop_pre_header
      _
    $region3: #{tpu_custom_call.1} parent=1 // loop_header
      %s15 = sphi 0, %s19
      %p16 = scmp.ge.s32.totalorder %s15, 4
      %s22 = sphi 0, %s34
      %s23 = sphi 0, %s30
      %s24 = sphi 0, %s22
      %s25 = sphi 0, %s23
      %s26 = sphi 0, %s24
      %s27 = sphi 0, %s25
      %s39 = sphi 0, %s41
      %s42 = sphi 0, %s39
      %s43 = sphi 0, %s42
      %s59 = sphi 0, %s43
      %s63 = sphi 0, %s63
      %s65 = sphi 0, %s63
      %s66 = sphi 0, %s65
      %s80 = sphi 0, %s66
      %s88 = sphi 0, %s90
      %s91 = sphi 0, %s88
      %s92 = sphi 0, %s91
      %s108 = sphi 0, %s92
    $region4: #{tpu_custom_call.1} parent=1 // loop_header_branch
      %18 = sbr.rel (%p16) target = $region8
    $region5: #{tpu_custom_call.1} parent=1 // loop_body
      %s20 = ssub.s32 %s15, 1
      %s21 = ssub.s32 %s15, 2
      %s28 = sadd.s32 1, %s23
      %p29 = scmp.ge.s32.totalorder %s28, 1
      %s30 = scalar_select %p29, 0, %s28
      %s31 = sadd.s32 1, %s22
      %s32 = scalar_select %p29, %s31, %s22
      %p33 = scmp.ge.s32.totalorder %s32, 2
      %s34 = scalar_select %p33, 0, %s32
      %s35 = ssub.s32 %s22, %s34
      %s36 = ssub.s32 %s23, %s30
      %s37 = sor.u32 %s35, %s36
      %p38 = scmp.eq.s32.totalorder %s37, 0
      %s40 = sadd.s32 %s39, 1
      %s41 = scalar_select %p38, %s39, %s40
      %p44 = pneg %p38
      %p45 = scmp.eq.s32.totalorder %s15, 1
      %p46 = por %p44, %p45
      %p47 = scmp.ne.s32.totalorder %s39, %s42
      %p48 = scmp.eq.s32.totalorder %s15, 0
      %p49 = por %p47, %p48
      %p50 = scmp.ne.s32.totalorder %s39, %s42
      %p51 = scmp.eq.s32.totalorder %s20, 1
      %p52 = por %p50, %p51
      %p53 = scmp.ne.s32.totalorder %s42, %s43
      %p54 = scmp.eq.s32.totalorder %s20, 0
      %p55 = por %p53, %p54
      %p56 = scmp.ne.s32.totalorder %s42, %s43
      %p57 = scmp.eq.s32.totalorder %s21, 1
      %p58 = por %p56, %p57
      %p60 = scmp.ne.s32.totalorder %s43, %s59
      %p61 = scmp.eq.s32.totalorder %s21, 0
      %p62 = por %p60, %p61
      %s64 = sadd.s32 %s63, 1
      %p67 = scmp.eq.s32.totalorder %s15, 1
      %p68 = scmp.ne.s32.totalorder %s63, %s65
      %p69 = scmp.eq.s32.totalorder %s15, 0
      %p70 = por %p68, %p69
      %p71 = scmp.ne.s32.totalorder %s63, %s65
      %p72 = scmp.eq.s32.totalorder %s20, 1
      %p73 = por %p71, %p72
      %p74 = scmp.ne.s32.totalorder %s65, %s66
      %p75 = scmp.eq.s32.totalorder %s20, 0
      %p76 = por %p74, %p75
      %p77 = scmp.ne.s32.totalorder %s65, %s66
      %p78 = scmp.eq.s32.totalorder %s21, 1
      %p79 = por %p77, %p78
      %p81 = scmp.ne.s32.totalorder %s66, %s80
      %p82 = scmp.eq.s32.totalorder %s21, 0
      %p83 = por %p81, %p82
      %s84 = ssub.s32 %s22, %s34
      %s85 = ssub.s32 %s23, %s30
      %s86 = sor.u32 %s84, %s85
      %p87 = scmp.eq.s32.totalorder %s86, 0
      %s89 = sadd.s32 %s88, 1
      %s90 = scalar_select %p87, %s88, %s89
      %p93 = pneg %p87
      %p94 = scmp.eq.s32.totalorder %s15, 1
      %p95 = por %p93, %p94
      %p96 = scmp.ne.s32.totalorder %s88, %s91
      %p97 = scmp.eq.s32.totalorder %s15, 0
      %p98 = por %p96, %p97
      %p99 = scmp.ne.s32.totalorder %s88, %s91
      %p100 = scmp.eq.s32.totalorder %s20, 1
      %p101 = por %p99, %p100
      %p102 = scmp.ne.s32.totalorder %s91, %s92
      %p103 = scmp.eq.s32.totalorder %s20, 0
      %p104 = por %p102, %p103
      %p105 = scmp.ne.s32.totalorder %s91, %s92
      %p106 = scmp.eq.s32.totalorder %s21, 1
      %p107 = por %p105, %p106
      %p109 = scmp.ne.s32.totalorder %s92, %s108
      %p110 = scmp.eq.s32.totalorder %s21, 0
      %p111 = por %p109, %p110
      %p112 = scmp.le.s32.totalorder 1, %s15
      %p113 = scmp.lt.s32.totalorder %s15, 3
      %p114 = pnand %p112, %p113
      %p115 = pneg %p114
      // Predicated region
      $region9: #{tpu_custom_call.1} parent=5 // pred_check
        _
      $region10: #{tpu_custom_call.1} parent=5 // pred_check_branch
        %117 = sbr.rel (%p114) target = $region12
      $region11: #{tpu_custom_call.1} parent=5 // pred_region
        %s118 = ssub.s32 %s15, 1
        // Predicated region
        $region13: #{tpu_custom_call.1} parent=11 // pred_check
          %p119 = pneg %p76
        $region14: #{tpu_custom_call.1} parent=11 // pred_check_branch
          %121 = sbr.rel (%p119) target = $region16
        $region15: #{tpu_custom_call.1} parent=11 // pred_region
          %123 = vsyncadd [#allocation6], 0
          %s124 = sshll.u32 %s1, 4
          %s125 = int_to_ptr.hbm [resolvable:$true] %s124
          %s126 = sshll.u32 [#allocation5], 4
          %s127 = int_to_ptr.vmem [resolvable:$true] %s126
          %132 = dma.hbm_to_vmem [thread:$0]  %s125, 512, %s127, [#allocation6], 128, 128, 8
        $region16: #{tpu_custom_call.1} parent=11 // pred_fallthru
          _
      $region12: #{tpu_custom_call.1} parent=5 // pred_fallthru
        _
      %p133 = scmp.lt.s32.totalorder %s15, 2
      // Predicated region
      $region17: #{tpu_custom_call.1} parent=5 // pred_check
        %p134 = pneg %p133
      $region18: #{tpu_custom_call.1} parent=5 // pred_check_branch
        %136 = sbr.rel (%p134) target = $region20
      $region19: #{tpu_custom_call.1} parent=5 // pred_region
        // Predicated region
        $region21: #{tpu_custom_call.1} parent=19 // pred_check
          %p137 = pneg %p49
        $region22: #{tpu_custom_call.1} parent=19 // pred_check_branch
          %139 = sbr.rel (%p137) target = $region24
        $region23: #{tpu_custom_call.1} parent=19 // pred_region
          %s140 = sand.u32 %s39, 1
          %s141 = scalar_lea.sflag [#allocation3], %s140
          %s142 = sand.u32 %s39, 1
          %s143 = smul.addr %s142, 576
          %s144 = scalar_lea.vmem [#allocation2], %s143
          %s145 = smul.u32 18, %s23
          %147 = vsyncadd %s141, 0
          %s148 = smul.addr %s22, 72
          %s149 = sadd.s32 %s145, %s148
          %s150 = smul.addr %s149, 8
          %s151 = scalar_lea.hbm %s0, %s150
          %s152 = sshll.u32 %s151, 4
          %s153 = int_to_ptr.hbm [resolvable:$true] %s152
          %s154 = sshll.u32 %s144, 4
          %s155 = int_to_ptr.vmem [resolvable:$true] %s154
          %160 = dma.hbm_to_vmem [thread:$0]  %s153, 9216, %s155, %s141, 2304, 2304, 144
        $region24: #{tpu_custom_call.1} parent=19 // pred_fallthru
          _
      $region20: #{tpu_custom_call.1} parent=5 // pred_fallthru
        _
      %p161 = scmp.le.s32.totalorder 1, %s15
      %p162 = scmp.lt.s32.totalorder %s15, 3
      %p163 = pnand %p161, %p162
      %p164 = pneg %p163
      // Predicated region
      $region25: #{tpu_custom_call.1} parent=5 // pred_check
        _
      $region26: #{tpu_custom_call.1} parent=5 // pred_check_branch
        %166 = sbr.rel (%p163) target = $region28
      $region27: #{tpu_custom_call.1} parent=5 // pred_region
        %s167 = ssub.s32 %s15, 1
        %s168 = sand.u32 %s42, 1
        %s169 = scalar_lea.sflag [#allocation3], %s168
        %s170 = sand.u32 %s42, 1
        %s171 = smul.addr %s170, 576
        %s172 = scalar_lea.vmem [#allocation2], %s171
        // Predicated region
        $region29: #{tpu_custom_call.1} parent=27 // pred_check
          %p173 = pneg %p55
        $region30: #{tpu_custom_call.1} parent=27 // pred_check_branch
          %175 = sbr.rel (%p173) target = $region32
        $region31: #{tpu_custom_call.1} parent=27 // pred_region
          %177 = dma.done %s169, 9216
        $region32: #{tpu_custom_call.1} parent=27 // pred_fallthru
          _
        // Predicated region
        $region33: #{tpu_custom_call.1} parent=27 // pred_check
          %p178 = pneg %p76
        $region34: #{tpu_custom_call.1} parent=27 // pred_check_branch
          %180 = sbr.rel (%p178) target = $region36
        $region35: #{tpu_custom_call.1} parent=27 // pred_region
          %182 = dma.done [#allocation6], 512
        $region36: #{tpu_custom_call.1} parent=27 // pred_fallthru
          _
        %s183 = sand.u32 %s42, 1
        %s184 = scalar_lea.sflag [#allocation3], %s183
        %s185 = sand.u32 %s42, 1
        %s186 = smul.addr %s185, 576
        %s187 = scalar_lea.vmem [#allocation2], %s186
        %p188 = pneg %p55
        %p189 = pneg %p52
        %p190 = pneg %p76
        %p191 = pneg %p73
        %p192 = pneg %p104
        %p193 = pneg %p101
        %s194 = sand.u32 %s91, 1
        %s195 = scalar_lea.sflag [#allocation4], %s194
        %s196 = sand.u32 %s91, 1
        %s197 = smul.addr %s196, 576
        %s198 = scalar_lea.vmem [#allocation7], %s197
        %s199 = smul.u32 18, %s25
        %s200 = smul.u32 18, %s25
        %v201 = vld [vmem:[#allocation5] sm:$0xff]
        %v202 = vld [vmem:[#allocation5 + $0x8] sm:$0xff]
        %v203 = vld [vmem:[#allocation5 + $0x10] sm:$0xff]
        %v204 = vld [vmem:[#allocation5 + $0x18] sm:$0xff]
        %v205 = vld [vmem:[%s172] sm:$0xff]
        %v206 = vld [vmem:[%s172 + $0x8] sm:$0xff]
        %v207 = vld [vmem:[%s172 + $0x10] sm:$0xff]
        %v208 = vld [vmem:[%s172 + $0x18] sm:$0xff]
        %v209 = vld [vmem:[%s172 + $0x20] sm:$0xff]
        %v210 = vld [vmem:[%s172 + $0x28] sm:$0xff]
        %v211 = vld [vmem:[%s172 + $0x30] sm:$0xff]
        %v212 = vld [vmem:[%s172 + $0x38] sm:$0xff]
        %v213 = vld [vmem:[%s172 + $0x40] sm:$0xff]
        %v214 = vld [vmem:[%s172 + $0x48] sm:$0xff]
        %v215 = vld [vmem:[%s172 + $0x50] sm:$0xff]
        %v216 = vld [vmem:[%s172 + $0x58] sm:$0xff]
        %v217 = vld [vmem:[%s172 + $0x60] sm:$0xff]
        %v218 = vld [vmem:[%s172 + $0x68] sm:$0xff]
        %v219 = vld [vmem:[%s172 + $0x70] sm:$0xff]
        %v220 = vld [vmem:[%s172 + $0x78] sm:$0xff]
        %v221 = vld [vmem:[%s172 + $0x80] sm:$0xff]
        %v222 = vld [vmem:[%s172 + $0x88] sm:$0xff]
        %v223 = vld [vmem:[%s172 + $0x90] sm:$0xff]
        %v224 = vld [vmem:[%s172 + $0x98] sm:$0xff]
        %v225 = vld [vmem:[%s172 + $0xa0] sm:$0xff]
        %v226 = vld [vmem:[%s172 + $0xa8] sm:$0xff]
        %v227 = vld [vmem:[%s172 + $0xb0] sm:$0xff]
        %v228 = vld [vmem:[%s172 + $0xb8] sm:$0xff]
        %v229 = vld [vmem:[%s172 + $0xc0] sm:$0xff]
        %v230 = vld [vmem:[%s172 + $0xc8] sm:$0xff]
        %v231 = vld [vmem:[%s172 + $0xd0] sm:$0xff]
        %v232 = vld [vmem:[%s172 + $0xd8] sm:$0xff]
        %v233 = vld [vmem:[%s172 + $0xe0] sm:$0xff]
        %v234 = vld [vmem:[%s172 + $0xe8] sm:$0xff]
        %v235 = vld [vmem:[%s172 + $0xf0] sm:$0xff]
        %v236 = vld [vmem:[%s172 + $0xf8] sm:$0xff]
        %v237 = vld [vmem:[%s172 + $0x100] sm:$0xff]
        %v238 = vld [vmem:[%s172 + $0x108] sm:$0xff]
        %v239 = vld [vmem:[%s172 + $0x110] sm:$0xff]
        %v240 = vld [vmem:[%s172 + $0x118] sm:$0xff]
        %v241 = vld [vmem:[%s172 + $0x120] sm:$0xff]
        %v242 = vld [vmem:[%s172 + $0x128] sm:$0xff]
        %v243 = vld [vmem:[%s172 + $0x130] sm:$0xff]
        %v244 = vld [vmem:[%s172 + $0x138] sm:$0xff]
        %v245 = vld [vmem:[%s172 + $0x140] sm:$0xff]
        %v246 = vld [vmem:[%s172 + $0x148] sm:$0xff]
        %v247 = vld [vmem:[%s172 + $0x150] sm:$0xff]
        %v248 = vld [vmem:[%s172 + $0x158] sm:$0xff]
        %v249 = vld [vmem:[%s172 + $0x160] sm:$0xff]
        %v250 = vld [vmem:[%s172 + $0x168] sm:$0xff]
        %v251 = vld [vmem:[%s172 + $0x170] sm:$0xff]
        %v252 = vld [vmem:[%s172 + $0x178] sm:$0xff]
        %v253 = vld [vmem:[%s172 + $0x180] sm:$0xff]
        %v254 = vld [vmem:[%s172 + $0x188] sm:$0xff]
        %v255 = vld [vmem:[%s172 + $0x190] sm:$0xff]
        %v256 = vld [vmem:[%s172 + $0x198] sm:$0xff]
        %v257 = vld [vmem:[%s172 + $0x1a0] sm:$0xff]
        %v258 = vld [vmem:[%s172 + $0x1a8] sm:$0xff]
        %v259 = vld [vmem:[%s172 + $0x1b0] sm:$0xff]
        %v260 = vld [vmem:[%s172 + $0x1b8] sm:$0xff]
        %v261 = vld [vmem:[%s172 + $0x1c0] sm:$0xff]
        %v262 = vld [vmem:[%s172 + $0x1c8] sm:$0xff]
        %v263 = vld [vmem:[%s172 + $0x1d0] sm:$0xff]
        %v264 = vld [vmem:[%s172 + $0x1d8] sm:$0xff]
        %v265 = vld [vmem:[%s172 + $0x1e0] sm:$0xff]
        %v266 = vld [vmem:[%s172 + $0x1e8] sm:$0xff]
        %v267 = vld [vmem:[%s172 + $0x1f0] sm:$0xff]
        %v268 = vld [vmem:[%s172 + $0x1f8] sm:$0xff]
        %v269 = vld [vmem:[%s172 + $0x200] sm:$0xff]
        %v270 = vld [vmem:[%s172 + $0x208] sm:$0xff]
        %v271 = vld [vmem:[%s172 + $0x210] sm:$0xff]
        %v272 = vld [vmem:[%s172 + $0x218] sm:$0xff]
        %v273 = vld [vmem:[%s172 + $0x220] sm:$0xff]
        %v274 = vld [vmem:[%s172 + $0x228] sm:$0xff]
        %v275 = vld [vmem:[%s172 + $0x230] sm:$0xff]
        %v276 = vld [vmem:[%s172 + $0x238] sm:$0xff]
        %vm277 = vcmask 261120
        %v279 = vsel %vm277, %v201, 0
        %v282 = vsel %vm277, %v202, 0
        %v285 = vsel %vm277, %v203, 0
        %v288 = vsel %vm277, %v204, 0
        %290 = vmatpush.msra.mxu0 0.0
        %291 = vmatpush.msra.mxu0 0.0
        %292 = vmatpush.msra.mxu0 0.0
        %293 = vmatpush.msra.mxu0 0.0
        %294 = vmatpush.msra.mxu0 0.0
        %295 = vmatpush.msra.mxu0 0.0
        %296 = vmatpush.msra.mxu0 0.0
        %297 = vmatpush.msra.mxu0 0.0
        %298 = vmatpush.msra.mxu0 0.0
        %299 = vmatpush.msra.mxu0 0.0
        %300 = vmatpush.msra.mxu0 0.0
        %301 = vmatpush.msra.mxu0 0.0
        %302 = vmatpush.msra.mxu0 %v259
        %303 = vmatpush.msra.mxu0 %v241
        %304 = vmatpush.msra.mxu0 %v223
        %305 = vmatpush.msra.mxu0 %v205
        %306 = vmatmul.f32.gmra.mxu0 %v279
        %v307 = vpop.f32.mrf.mxu0
        %v308 = vadd.f32 0.0, %v307
        %309 = vmatmul.f32.gmra.mxu0 %v282
        %v310 = vpop.f32.mrf.mxu0
        %v311 = vadd.f32 0.0, %v310
        %312 = vmatmul.f32.gmra.mxu0 %v285
        %v313 = vpop.f32.mrf.mxu0
        %v314 = vadd.f32 0.0, %v313
        %315 = vmatmul.f32.gmra.mxu0 %v288
        %v316 = vpop.f32.mrf.mxu0
        %v317 = vadd.f32 0.0, %v316
        %318 = vdwg.mxu0
        %319 = vmatpush.msra.mxu0 0.0
        %320 = vmatpush.msra.mxu0 0.0
        %321 = vmatpush.msra.mxu0 0.0
        %322 = vmatpush.msra.mxu0 0.0
        %323 = vmatpush.msra.mxu0 0.0
        %324 = vmatpush.msra.mxu0 0.0
        %325 = vmatpush.msra.mxu0 0.0
        %326 = vmatpush.msra.mxu0 0.0
        %327 = vmatpush.msra.mxu0 0.0
        %328 = vmatpush.msra.mxu0 0.0
        %329 = vmatpush.msra.mxu0 0.0
        %330 = vmatpush.msra.mxu0 0.0
        %331 = vmatpush.msra.mxu0 %v260
        %332 = vmatpush.msra.mxu0 %v242
        %333 = vmatpush.msra.mxu0 %v224
        %334 = vmatpush.msra.mxu0 %v206
        %335 = vmatmul.f32.gmra.mxu0 %v279
        %v336 = vpop.f32.mrf.mxu0
        %v337 = vadd.f32 0.0, %v336
        %338 = vmatmul.f32.gmra.mxu0 %v282
        %v339 = vpop.f32.mrf.mxu0
        %v340 = vadd.f32 0.0, %v339
        %341 = vmatmul.f32.gmra.mxu0 %v285
        %v342 = vpop.f32.mrf.mxu0
        %v343 = vadd.f32 0.0, %v342
        %344 = vmatmul.f32.gmra.mxu0 %v288
        %v345 = vpop.f32.mrf.mxu0
        %v346 = vadd.f32 0.0, %v345
        %347 = vdwg.mxu0
        %348 = vmatpush.msra.mxu0 0.0
        %349 = vmatpush.msra.mxu0 0.0
        %350 = vmatpush.msra.mxu0 0.0
        %351 = vmatpush.msra.mxu0 0.0
        %352 = vmatpush.msra.mxu0 0.0
        %353 = vmatpush.msra.mxu0 0.0
        %354 = vmatpush.msra.mxu0 0.0
        %355 = vmatpush.msra.mxu0 0.0
        %356 = vmatpush.msra.mxu0 0.0
        %357 = vmatpush.msra.mxu0 0.0
        %358 = vmatpush.msra.mxu0 0.0
        %359 = vmatpush.msra.mxu0 0.0
        %360 = vmatpush.msra.mxu0 %v261
        %361 = vmatpush.msra.mxu0 %v243
        %362 = vmatpush.msra.mxu0 %v225
        %363 = vmatpush.msra.mxu0 %v207
        %364 = vmatmul.f32.gmra.mxu0 %v279
        %v365 = vpop.f32.mrf.mxu0
        %v366 = vadd.f32 0.0, %v365
        %367 = vmatmul.f32.gmra.mxu0 %v282
        %v368 = vpop.f32.mrf.mxu0
        %v369 = vadd.f32 0.0, %v368
        %370 = vmatmul.f32.gmra.mxu0 %v285
        %v371 = vpop.f32.mrf.mxu0
        %v372 = vadd.f32 0.0, %v371
        %373 = vmatmul.f32.gmra.mxu0 %v288
        %v374 = vpop.f32.mrf.mxu0
        %v375 = vadd.f32 0.0, %v374
        %376 = vdwg.mxu0
        %377 = vmatpush.msra.mxu0 0.0
        %378 = vmatpush.msra.mxu0 0.0
        %379 = vmatpush.msra.mxu0 0.0
        %380 = vmatpush.msra.mxu0 0.0
        %381 = vmatpush.msra.mxu0 0.0
        %382 = vmatpush.msra.mxu0 0.0
        %383 = vmatpush.msra.mxu0 0.0
        %384 = vmatpush.msra.mxu0 0.0
        %385 = vmatpush.msra.mxu0 0.0
        %386 = vmatpush.msra.mxu0 0.0
        %387 = vmatpush.msra.mxu0 0.0
        %388 = vmatpush.msra.mxu0 0.0
        %389 = vmatpush.msra.mxu0 %v262
        %390 = vmatpush.msra.mxu0 %v244
        %391 = vmatpush.msra.mxu0 %v226
        %392 = vmatpush.msra.mxu0 %v208
        %393 = vmatmul.f32.gmra.mxu0 %v279
        %v394 = vpop.f32.mrf.mxu0
        %v395 = vadd.f32 0.0, %v394
        %396 = vmatmul.f32.gmra.mxu0 %v282
        %v397 = vpop.f32.mrf.mxu0
        %v398 = vadd.f32 0.0, %v397
        %399 = vmatmul.f32.gmra.mxu0 %v285
        %v400 = vpop.f32.mrf.mxu0
        %v401 = vadd.f32 0.0, %v400
        %402 = vmatmul.f32.gmra.mxu0 %v288
        %v403 = vpop.f32.mrf.mxu0
        %v404 = vadd.f32 0.0, %v403
        %405 = vdwg.mxu0
        %406 = vmatpush.msra.mxu0 0.0
        %407 = vmatpush.msra.mxu0 0.0
        %408 = vmatpush.msra.mxu0 0.0
        %409 = vmatpush.msra.mxu0 0.0
        %410 = vmatpush.msra.mxu0 0.0
        %411 = vmatpush.msra.mxu0 0.0
        %412 = vmatpush.msra.mxu0 0.0
        %413 = vmatpush.msra.mxu0 0.0
        %414 = vmatpush.msra.mxu0 0.0
        %415 = vmatpush.msra.mxu0 0.0
        %416 = vmatpush.msra.mxu0 0.0
        %417 = vmatpush.msra.mxu0 0.0
        %418 = vmatpush.msra.mxu0 %v263
        %419 = vmatpush.msra.mxu0 %v245
        %420 = vmatpush.msra.mxu0 %v227
        %421 = vmatpush.msra.mxu0 %v209
        %422 = vmatmul.f32.gmra.mxu0 %v279
        %v423 = vpop.f32.mrf.mxu0
        %v424 = vadd.f32 0.0, %v423
        %425 = vmatmul.f32.gmra.mxu0 %v282
        %v426 = vpop.f32.mrf.mxu0
        %v427 = vadd.f32 0.0, %v426
        %428 = vmatmul.f32.gmra.mxu0 %v285
        %v429 = vpop.f32.mrf.mxu0
        %v430 = vadd.f32 0.0, %v429
        %431 = vmatmul.f32.gmra.mxu0 %v288
        %v432 = vpop.f32.mrf.mxu0
        %v433 = vadd.f32 0.0, %v432
        %434 = vdwg.mxu0
        %435 = vmatpush.msra.mxu0 0.0
        %436 = vmatpush.msra.mxu0 0.0
        %437 = vmatpush.msra.mxu0 0.0
        %438 = vmatpush.msra.mxu0 0.0
        %439 = vmatpush.msra.mxu0 0.0
        %440 = vmatpush.msra.mxu0 0.0
        %441 = vmatpush.msra.mxu0 0.0
        %442 = vmatpush.msra.mxu0 0.0
        %443 = vmatpush.msra.mxu0 0.0
        %444 = vmatpush.msra.mxu0 0.0
        %445 = vmatpush.msra.mxu0 0.0
        %446 = vmatpush.msra.mxu0 0.0
        %447 = vmatpush.msra.mxu0 %v264
        %448 = vmatpush.msra.mxu0 %v246
        %449 = vmatpush.msra.mxu0 %v228
        %450 = vmatpush.msra.mxu0 %v210
        %451 = vmatmul.f32.gmra.mxu0 %v279
        %v452 = vpop.f32.mrf.mxu0
        %v453 = vadd.f32 0.0, %v452
        %454 = vmatmul.f32.gmra.mxu0 %v282
        %v455 = vpop.f32.mrf.mxu0
        %v456 = vadd.f32 0.0, %v455
        %457 = vmatmul.f32.gmra.mxu0 %v285
        %v458 = vpop.f32.mrf.mxu0
        %v459 = vadd.f32 0.0, %v458
        %460 = vmatmul.f32.gmra.mxu0 %v288
        %v461 = vpop.f32.mrf.mxu0
        %v462 = vadd.f32 0.0, %v461
        %463 = vdwg.mxu0
        %464 = vmatpush.msra.mxu0 0.0
        %465 = vmatpush.msra.mxu0 0.0
        %466 = vmatpush.msra.mxu0 0.0
        %467 = vmatpush.msra.mxu0 0.0
        %468 = vmatpush.msra.mxu0 0.0
        %469 = vmatpush.msra.mxu0 0.0
        %470 = vmatpush.msra.mxu0 0.0
        %471 = vmatpush.msra.mxu0 0.0
        %472 = vmatpush.msra.mxu0 0.0
        %473 = vmatpush.msra.mxu0 0.0
        %474 = vmatpush.msra.mxu0 0.0
        %475 = vmatpush.msra.mxu0 0.0
        %476 = vmatpush.msra.mxu0 %v265
        %477 = vmatpush.msra.mxu0 %v247
        %478 = vmatpush.msra.mxu0 %v229
        %479 = vmatpush.msra.mxu0 %v211
        %480 = vmatmul.f32.gmra.mxu0 %v279
        %v481 = vpop.f32.mrf.mxu0
        %v482 = vadd.f32 0.0, %v481
        %483 = vmatmul.f32.gmra.mxu0 %v282
        %v484 = vpop.f32.mrf.mxu0
        %v485 = vadd.f32 0.0, %v484
        %486 = vmatmul.f32.gmra.mxu0 %v285
        %v487 = vpop.f32.mrf.mxu0
        %v488 = vadd.f32 0.0, %v487
        %489 = vmatmul.f32.gmra.mxu0 %v288
        %v490 = vpop.f32.mrf.mxu0
        %v491 = vadd.f32 0.0, %v490
        %492 = vdwg.mxu0
        %493 = vmatpush.msra.mxu0 0.0
        %494 = vmatpush.msra.mxu0 0.0
        %495 = vmatpush.msra.mxu0 0.0
        %496 = vmatpush.msra.mxu0 0.0
        %497 = vmatpush.msra.mxu0 0.0
        %498 = vmatpush.msra.mxu0 0.0
        %499 = vmatpush.msra.mxu0 0.0
        %500 = vmatpush.msra.mxu0 0.0
        %501 = vmatpush.msra.mxu0 0.0
        %502 = vmatpush.msra.mxu0 0.0
        %503 = vmatpush.msra.mxu0 0.0
        %504 = vmatpush.msra.mxu0 0.0
        %505 = vmatpush.msra.mxu0 %v266
        %506 = vmatpush.msra.mxu0 %v248
        %507 = vmatpush.msra.mxu0 %v230
        %508 = vmatpush.msra.mxu0 %v212
        %509 = vmatmul.f32.gmra.mxu0 %v279
        %v510 = vpop.f32.mrf.mxu0
        %v511 = vadd.f32 0.0, %v510
        %512 = vmatmul.f32.gmra.mxu0 %v282
        %v513 = vpop.f32.mrf.mxu0
        %v514 = vadd.f32 0.0, %v513
        %515 = vmatmul.f32.gmra.mxu0 %v285
        %v516 = vpop.f32.mrf.mxu0
        %v517 = vadd.f32 0.0, %v516
        %518 = vmatmul.f32.gmra.mxu0 %v288
        %v519 = vpop.f32.mrf.mxu0
        %v520 = vadd.f32 0.0, %v519
        %521 = vdwg.mxu0
        %522 = vmatpush.msra.mxu0 0.0
        %523 = vmatpush.msra.mxu0 0.0
        %524 = vmatpush.msra.mxu0 0.0
        %525 = vmatpush.msra.mxu0 0.0
        %526 = vmatpush.msra.mxu0 0.0
        %527 = vmatpush.msra.mxu0 0.0
        %528 = vmatpush.msra.mxu0 0.0
        %529 = vmatpush.msra.mxu0 0.0
        %530 = vmatpush.msra.mxu0 0.0
        %531 = vmatpush.msra.mxu0 0.0
        %532 = vmatpush.msra.mxu0 0.0
        %533 = vmatpush.msra.mxu0 0.0
        %534 = vmatpush.msra.mxu0 %v267
        %535 = vmatpush.msra.mxu0 %v249
        %536 = vmatpush.msra.mxu0 %v231
        %537 = vmatpush.msra.mxu0 %v213
        %538 = vmatmul.f32.gmra.mxu0 %v279
        %v539 = vpop.f32.mrf.mxu0
        %v540 = vadd.f32 0.0, %v539
        %541 = vmatmul.f32.gmra.mxu0 %v282
        %v542 = vpop.f32.mrf.mxu0
        %v543 = vadd.f32 0.0, %v542
        %544 = vmatmul.f32.gmra.mxu0 %v285
        %v545 = vpop.f32.mrf.mxu0
        %v546 = vadd.f32 0.0, %v545
        %547 = vmatmul.f32.gmra.mxu0 %v288
        %v548 = vpop.f32.mrf.mxu0
        %v549 = vadd.f32 0.0, %v548
        %550 = vdwg.mxu0
        %551 = vmatpush.msra.mxu0 0.0
        %552 = vmatpush.msra.mxu0 0.0
        %553 = vmatpush.msra.mxu0 0.0
        %554 = vmatpush.msra.mxu0 0.0
        %555 = vmatpush.msra.mxu0 0.0
        %556 = vmatpush.msra.mxu0 0.0
        %557 = vmatpush.msra.mxu0 0.0
        %558 = vmatpush.msra.mxu0 0.0
        %559 = vmatpush.msra.mxu0 0.0
        %560 = vmatpush.msra.mxu0 0.0
        %561 = vmatpush.msra.mxu0 0.0
        %562 = vmatpush.msra.mxu0 0.0
        %563 = vmatpush.msra.mxu0 %v268
        %564 = vmatpush.msra.mxu0 %v250
        %565 = vmatpush.msra.mxu0 %v232
        %566 = vmatpush.msra.mxu0 %v214
        %567 = vmatmul.f32.gmra.mxu0 %v279
        %v568 = vpop.f32.mrf.mxu0
        %v569 = vadd.f32 0.0, %v568
        %570 = vmatmul.f32.gmra.mxu0 %v282
        %v571 = vpop.f32.mrf.mxu0
        %v572 = vadd.f32 0.0, %v571
        %573 = vmatmul.f32.gmra.mxu0 %v285
        %v574 = vpop.f32.mrf.mxu0
        %v575 = vadd.f32 0.0, %v574
        %576 = vmatmul.f32.gmra.mxu0 %v288
        %v577 = vpop.f32.mrf.mxu0
        %v578 = vadd.f32 0.0, %v577
        %579 = vdwg.mxu0
        %580 = vmatpush.msra.mxu0 0.0
        %581 = vmatpush.msra.mxu0 0.0
        %582 = vmatpush.msra.mxu0 0.0
        %583 = vmatpush.msra.mxu0 0.0
        %584 = vmatpush.msra.mxu0 0.0
        %585 = vmatpush.msra.mxu0 0.0
        %586 = vmatpush.msra.mxu0 0.0
        %587 = vmatpush.msra.mxu0 0.0
        %588 = vmatpush.msra.mxu0 0.0
        %589 = vmatpush.msra.mxu0 0.0
        %590 = vmatpush.msra.mxu0 0.0
        %591 = vmatpush.msra.mxu0 0.0
        %592 = vmatpush.msra.mxu0 %v269
        %593 = vmatpush.msra.mxu0 %v251
        %594 = vmatpush.msra.mxu0 %v233
        %595 = vmatpush.msra.mxu0 %v215
        %596 = vmatmul.f32.gmra.mxu0 %v279
        %v597 = vpop.f32.mrf.mxu0
        %v598 = vadd.f32 0.0, %v597
        %599 = vmatmul.f32.gmra.mxu0 %v282
        %v600 = vpop.f32.mrf.mxu0
        %v601 = vadd.f32 0.0, %v600
        %602 = vmatmul.f32.gmra.mxu0 %v285
        %v603 = vpop.f32.mrf.mxu0
        %v604 = vadd.f32 0.0, %v603
        %605 = vmatmul.f32.gmra.mxu0 %v288
        %v606 = vpop.f32.mrf.mxu0
        %v607 = vadd.f32 0.0, %v606
        %608 = vdwg.mxu0
        %609 = vmatpush.msra.mxu0 0.0
        %610 = vmatpush.msra.mxu0 0.0
        %611 = vmatpush.msra.mxu0 0.0
        %612 = vmatpush.msra.mxu0 0.0
        %613 = vmatpush.msra.mxu0 0.0
        %614 = vmatpush.msra.mxu0 0.0
        %615 = vmatpush.msra.mxu0 0.0
        %616 = vmatpush.msra.mxu0 0.0
        %617 = vmatpush.msra.mxu0 0.0
        %618 = vmatpush.msra.mxu0 0.0
        %619 = vmatpush.msra.mxu0 0.0
        %620 = vmatpush.msra.mxu0 0.0
        %621 = vmatpush.msra.mxu0 %v270
        %622 = vmatpush.msra.mxu0 %v252
        %623 = vmatpush.msra.mxu0 %v234
        %624 = vmatpush.msra.mxu0 %v216
        %625 = vmatmul.f32.gmra.mxu0 %v279
        %v626 = vpop.f32.mrf.mxu0
        %v627 = vadd.f32 0.0, %v626
        %628 = vmatmul.f32.gmra.mxu0 %v282
        %v629 = vpop.f32.mrf.mxu0
        %v630 = vadd.f32 0.0, %v629
        %631 = vmatmul.f32.gmra.mxu0 %v285
        %v632 = vpop.f32.mrf.mxu0
        %v633 = vadd.f32 0.0, %v632
        %634 = vmatmul.f32.gmra.mxu0 %v288
        %v635 = vpop.f32.mrf.mxu0
        %v636 = vadd.f32 0.0, %v635
        %637 = vdwg.mxu0
        %638 = vmatpush.msra.mxu0 0.0
        %639 = vmatpush.msra.mxu0 0.0
        %640 = vmatpush.msra.mxu0 0.0
        %641 = vmatpush.msra.mxu0 0.0
        %642 = vmatpush.msra.mxu0 0.0
        %643 = vmatpush.msra.mxu0 0.0
        %644 = vmatpush.msra.mxu0 0.0
        %645 = vmatpush.msra.mxu0 0.0
        %646 = vmatpush.msra.mxu0 0.0
        %647 = vmatpush.msra.mxu0 0.0
        %648 = vmatpush.msra.mxu0 0.0
        %649 = vmatpush.msra.mxu0 0.0
        %650 = vmatpush.msra.mxu0 %v271
        %651 = vmatpush.msra.mxu0 %v253
        %652 = vmatpush.msra.mxu0 %v235
        %653 = vmatpush.msra.mxu0 %v217
        %654 = vmatmul.f32.gmra.mxu0 %v279
        %v655 = vpop.f32.mrf.mxu0
        %v656 = vadd.f32 0.0, %v655
        %657 = vmatmul.f32.gmra.mxu0 %v282
        %v658 = vpop.f32.mrf.mxu0
        %v659 = vadd.f32 0.0, %v658
        %660 = vmatmul.f32.gmra.mxu0 %v285
        %v661 = vpop.f32.mrf.mxu0
        %v662 = vadd.f32 0.0, %v661
        %663 = vmatmul.f32.gmra.mxu0 %v288
        %v664 = vpop.f32.mrf.mxu0
        %v665 = vadd.f32 0.0, %v664
        %666 = vdwg.mxu0
        %667 = vmatpush.msra.mxu0 0.0
        %668 = vmatpush.msra.mxu0 0.0
        %669 = vmatpush.msra.mxu0 0.0
        %670 = vmatpush.msra.mxu0 0.0
        %671 = vmatpush.msra.mxu0 0.0
        %672 = vmatpush.msra.mxu0 0.0
        %673 = vmatpush.msra.mxu0 0.0
        %674 = vmatpush.msra.mxu0 0.0
        %675 = vmatpush.msra.mxu0 0.0
        %676 = vmatpush.msra.mxu0 0.0
        %677 = vmatpush.msra.mxu0 0.0
        %678 = vmatpush.msra.mxu0 0.0
        %679 = vmatpush.msra.mxu0 %v272
        %680 = vmatpush.msra.mxu0 %v254
        %681 = vmatpush.msra.mxu0 %v236
        %682 = vmatpush.msra.mxu0 %v218
        %683 = vmatmul.f32.gmra.mxu0 %v279
        %v684 = vpop.f32.mrf.mxu0
        %v685 = vadd.f32 0.0, %v684
        %686 = vmatmul.f32.gmra.mxu0 %v282
        %v687 = vpop.f32.mrf.mxu0
        %v688 = vadd.f32 0.0, %v687
        %689 = vmatmul.f32.gmra.mxu0 %v285
        %v690 = vpop.f32.mrf.mxu0
        %v691 = vadd.f32 0.0, %v690
        %692 = vmatmul.f32.gmra.mxu0 %v288
        %v693 = vpop.f32.mrf.mxu0
        %v694 = vadd.f32 0.0, %v693
        %695 = vdwg.mxu0
        %696 = vmatpush.msra.mxu0 0.0
        %697 = vmatpush.msra.mxu0 0.0
        %698 = vmatpush.msra.mxu0 0.0
        %699 = vmatpush.msra.mxu0 0.0
        %700 = vmatpush.msra.mxu0 0.0
        %701 = vmatpush.msra.mxu0 0.0
        %702 = vmatpush.msra.mxu0 0.0
        %703 = vmatpush.msra.mxu0 0.0
        %704 = vmatpush.msra.mxu0 0.0
        %705 = vmatpush.msra.mxu0 0.0
        %706 = vmatpush.msra.mxu0 0.0
        %707 = vmatpush.msra.mxu0 0.0
        %708 = vmatpush.msra.mxu0 %v273
        %709 = vmatpush.msra.mxu0 %v255
        %710 = vmatpush.msra.mxu0 %v237
        %711 = vmatpush.msra.mxu0 %v219
        %712 = vmatmul.f32.gmra.mxu0 %v279
        %v713 = vpop.f32.mrf.mxu0
        %v714 = vadd.f32 0.0, %v713
        %715 = vmatmul.f32.gmra.mxu0 %v282
        %v716 = vpop.f32.mrf.mxu0
        %v717 = vadd.f32 0.0, %v716
        %718 = vmatmul.f32.gmra.mxu0 %v285
        %v719 = vpop.f32.mrf.mxu0
        %v720 = vadd.f32 0.0, %v719
        %721 = vmatmul.f32.gmra.mxu0 %v288
        %v722 = vpop.f32.mrf.mxu0
        %v723 = vadd.f32 0.0, %v722
        %724 = vdwg.mxu0
        %725 = vmatpush.msra.mxu0 0.0
        %726 = vmatpush.msra.mxu0 0.0
        %727 = vmatpush.msra.mxu0 0.0
        %728 = vmatpush.msra.mxu0 0.0
        %729 = vmatpush.msra.mxu0 0.0
        %730 = vmatpush.msra.mxu0 0.0
        %731 = vmatpush.msra.mxu0 0.0
        %732 = vmatpush.msra.mxu0 0.0
        %733 = vmatpush.msra.mxu0 0.0
        %734 = vmatpush.msra.mxu0 0.0
        %735 = vmatpush.msra.mxu0 0.0
        %736 = vmatpush.msra.mxu0 0.0
        %737 = vmatpush.msra.mxu0 %v274
        %738 = vmatpush.msra.mxu0 %v256
        %739 = vmatpush.msra.mxu0 %v238
        %740 = vmatpush.msra.mxu0 %v220
        %741 = vmatmul.f32.gmra.mxu0 %v279
        %v742 = vpop.f32.mrf.mxu0
        %v743 = vadd.f32 0.0, %v742
        %744 = vmatmul.f32.gmra.mxu0 %v282
        %v745 = vpop.f32.mrf.mxu0
        %v746 = vadd.f32 0.0, %v745
        %747 = vmatmul.f32.gmra.mxu0 %v285
        %v748 = vpop.f32.mrf.mxu0
        %v749 = vadd.f32 0.0, %v748
        %750 = vmatmul.f32.gmra.mxu0 %v288
        %v751 = vpop.f32.mrf.mxu0
        %v752 = vadd.f32 0.0, %v751
        %753 = vdwg.mxu0
        %754 = vmatpush.msra.mxu0 0.0
        %755 = vmatpush.msra.mxu0 0.0
        %756 = vmatpush.msra.mxu0 0.0
        %757 = vmatpush.msra.mxu0 0.0
        %758 = vmatpush.msra.mxu0 0.0
        %759 = vmatpush.msra.mxu0 0.0
        %760 = vmatpush.msra.mxu0 0.0
        %761 = vmatpush.msra.mxu0 0.0
        %762 = vmatpush.msra.mxu0 0.0
        %763 = vmatpush.msra.mxu0 0.0
        %764 = vmatpush.msra.mxu0 0.0
        %765 = vmatpush.msra.mxu0 0.0
        %766 = vmatpush.msra.mxu0 %v275
        %767 = vmatpush.msra.mxu0 %v257
        %768 = vmatpush.msra.mxu0 %v239
        %769 = vmatpush.msra.mxu0 %v221
        %770 = vmatmul.f32.gmra.mxu0 %v279
        %v771 = vpop.f32.mrf.mxu0
        %v772 = vadd.f32 0.0, %v771
        %773 = vmatmul.f32.gmra.mxu0 %v282
        %v774 = vpop.f32.mrf.mxu0
        %v775 = vadd.f32 0.0, %v774
        %776 = vmatmul.f32.gmra.mxu0 %v285
        %v777 = vpop.f32.mrf.mxu0
        %v778 = vadd.f32 0.0, %v777
        %779 = vmatmul.f32.gmra.mxu0 %v288
        %v780 = vpop.f32.mrf.mxu0
        %v781 = vadd.f32 0.0, %v780
        %782 = vdwg.mxu0
        %783 = vmatpush.msra.mxu0 0.0
        %784 = vmatpush.msra.mxu0 0.0
        %785 = vmatpush.msra.mxu0 0.0
        %786 = vmatpush.msra.mxu0 0.0
        %787 = vmatpush.msra.mxu0 0.0
        %788 = vmatpush.msra.mxu0 0.0
        %789 = vmatpush.msra.mxu0 0.0
        %790 = vmatpush.msra.mxu0 0.0
        %791 = vmatpush.msra.mxu0 0.0
        %792 = vmatpush.msra.mxu0 0.0
        %793 = vmatpush.msra.mxu0 0.0
        %794 = vmatpush.msra.mxu0 0.0
        %795 = vmatpush.msra.mxu0 %v276
        %796 = vmatpush.msra.mxu0 %v258
        %797 = vmatpush.msra.mxu0 %v240
        %798 = vmatpush.msra.mxu0 %v222
        %799 = vmatmul.f32.gmra.mxu0 %v279
        %v800 = vpop.f32.mrf.mxu0
        %v801 = vadd.f32 0.0, %v800
        %802 = vmatmul.f32.gmra.mxu0 %v282
        %v803 = vpop.f32.mrf.mxu0
        %v804 = vadd.f32 0.0, %v803
        %805 = vmatmul.f32.gmra.mxu0 %v285
        %v806 = vpop.f32.mrf.mxu0
        %v807 = vadd.f32 0.0, %v806
        %808 = vmatmul.f32.gmra.mxu0 %v288
        %v809 = vpop.f32.mrf.mxu0
        %v810 = vadd.f32 0.0, %v809
        %811 = vdwg.mxu0
        %812 = vst [vmem:[%s198] sm:$0xff] %v308
        %813 = vst [vmem:[%s198 + $0x8] sm:$0xff] %v337
        %814 = vst [vmem:[%s198 + $0x10] sm:$0xff] %v366
        %815 = vst [vmem:[%s198 + $0x18] sm:$0xff] %v395
        %816 = vst [vmem:[%s198 + $0x20] sm:$0xff] %v424
        %817 = vst [vmem:[%s198 + $0x28] sm:$0xff] %v453
        %818 = vst [vmem:[%s198 + $0x30] sm:$0xff] %v482
        %819 = vst [vmem:[%s198 + $0x38] sm:$0xff] %v511
        %820 = vst [vmem:[%s198 + $0x40] sm:$0xff] %v540
        %821 = vst [vmem:[%s198 + $0x48] sm:$0xff] %v569
        %822 = vst [vmem:[%s198 + $0x50] sm:$0xff] %v598
        %823 = vst [vmem:[%s198 + $0x58] sm:$0xff] %v627
        %824 = vst [vmem:[%s198 + $0x60] sm:$0xff] %v656
        %825 = vst [vmem:[%s198 + $0x68] sm:$0xff] %v685
        %826 = vst [vmem:[%s198 + $0x70] sm:$0xff] %v714
        %827 = vst [vmem:[%s198 + $0x78] sm:$0xff] %v743
        %828 = vst [vmem:[%s198 + $0x80] sm:$0xff] %v772
        %829 = vst [vmem:[%s198 + $0x88] sm:$0xff] %v801
        %830 = vst [vmem:[%s198 + $0x90] sm:$0xff] %v311
        %831 = vst [vmem:[%s198 + $0x98] sm:$0xff] %v340
        %832 = vst [vmem:[%s198 + $0xa0] sm:$0xff] %v369
        %833 = vst [vmem:[%s198 + $0xa8] sm:$0xff] %v398
        %834 = vst [vmem:[%s198 + $0xb0] sm:$0xff] %v427
        %835 = vst [vmem:[%s198 + $0xb8] sm:$0xff] %v456
        %836 = vst [vmem:[%s198 + $0xc0] sm:$0xff] %v485
        %837 = vst [vmem:[%s198 + $0xc8] sm:$0xff] %v514
        %838 = vst [vmem:[%s198 + $0xd0] sm:$0xff] %v543
        %839 = vst [vmem:[%s198 + $0xd8] sm:$0xff] %v572
        %840 = vst [vmem:[%s198 + $0xe0] sm:$0xff] %v601
        %841 = vst [vmem:[%s198 + $0xe8] sm:$0xff] %v630
        %842 = vst [vmem:[%s198 + $0xf0] sm:$0xff] %v659
        %843 = vst [vmem:[%s198 + $0xf8] sm:$0xff] %v688
        %844 = vst [vmem:[%s198 + $0x100] sm:$0xff] %v717
        %845 = vst [vmem:[%s198 + $0x108] sm:$0xff] %v746
        %846 = vst [vmem:[%s198 + $0x110] sm:$0xff] %v775
        %847 = vst [vmem:[%s198 + $0x118] sm:$0xff] %v804
        %848 = vst [vmem:[%s198 + $0x120] sm:$0xff] %v314
        %849 = vst [vmem:[%s198 + $0x128] sm:$0xff] %v343
        %850 = vst [vmem:[%s198 + $0x130] sm:$0xff] %v372
        %851 = vst [vmem:[%s198 + $0x138] sm:$0xff] %v401
        %852 = vst [vmem:[%s198 + $0x140] sm:$0xff] %v430
        %853 = vst [vmem:[%s198 + $0x148] sm:$0xff] %v459
        %854 = vst [vmem:[%s198 + $0x150] sm:$0xff] %v488
        %855 = vst [vmem:[%s198 + $0x158] sm:$0xff] %v517
        %856 = vst [vmem:[%s198 + $0x160] sm:$0xff] %v546
        %857 = vst [vmem:[%s198 + $0x168] sm:$0xff] %v575
        %858 = vst [vmem:[%s198 + $0x170] sm:$0xff] %v604
        %859 = vst [vmem:[%s198 + $0x178] sm:$0xff] %v633
        %860 = vst [vmem:[%s198 + $0x180] sm:$0xff] %v662
        %861 = vst [vmem:[%s198 + $0x188] sm:$0xff] %v691
        %862 = vst [vmem:[%s198 + $0x190] sm:$0xff] %v720
        %863 = vst [vmem:[%s198 + $0x198] sm:$0xff] %v749
        %864 = vst [vmem:[%s198 + $0x1a0] sm:$0xff] %v778
        %865 = vst [vmem:[%s198 + $0x1a8] sm:$0xff] %v807
        %866 = vst [vmem:[%s198 + $0x1b0] sm:$0xff] %v317
        %867 = vst [vmem:[%s198 + $0x1b8] sm:$0xff] %v346
        %868 = vst [vmem:[%s198 + $0x1c0] sm:$0xff] %v375
        %869 = vst [vmem:[%s198 + $0x1c8] sm:$0xff] %v404
        %870 = vst [vmem:[%s198 + $0x1d0] sm:$0xff] %v433
        %871 = vst [vmem:[%s198 + $0x1d8] sm:$0xff] %v462
        %872 = vst [vmem:[%s198 + $0x1e0] sm:$0xff] %v491
        %873 = vst [vmem:[%s198 + $0x1e8] sm:$0xff] %v520
        %874 = vst [vmem:[%s198 + $0x1f0] sm:$0xff] %v549
        %875 = vst [vmem:[%s198 + $0x1f8] sm:$0xff] %v578
        %876 = vst [vmem:[%s198 + $0x200] sm:$0xff] %v607
        %877 = vst [vmem:[%s198 + $0x208] sm:$0xff] %v636
        %878 = vst [vmem:[%s198 + $0x210] sm:$0xff] %v665
        %879 = vst [vmem:[%s198 + $0x218] sm:$0xff] %v694
        %880 = vst [vmem:[%s198 + $0x220] sm:$0xff] %v723
        %881 = vst [vmem:[%s198 + $0x228] sm:$0xff] %v752
        %882 = vst [vmem:[%s198 + $0x230] sm:$0xff] %v781
        %883 = vst [vmem:[%s198 + $0x238] sm:$0xff] %v810
        %s884 = sand.u32 %s91, 1
        %s885 = scalar_lea.sflag [#allocation4], %s884
        %s886 = sand.u32 %s91, 1
        %s887 = smul.addr %s886, 576
        %s888 = scalar_lea.vmem [#allocation7], %s887
        // Predicated region
        $region37: #{tpu_custom_call.1} parent=27 // pred_check
          %p889 = pneg %p101
        $region38: #{tpu_custom_call.1} parent=27 // pred_check_branch
          %891 = sbr.rel (%p889) target = $region40
        $region39: #{tpu_custom_call.1} parent=27 // pred_region
          %s892 = smul.u32 18, %s25
          %894 = vsyncadd %s885, 0
          %s895 = smul.addr %s24, 72
          %s896 = sadd.s32 %s892, %s895
          %s897 = smul.addr %s896, 8
          %s898 = scalar_lea.hbm %s2, %s897
          %s899 = sshll.u32 %s888, 4
          %s900 = int_to_ptr.vmem [resolvable:$true] %s899
          %s901 = sshll.u32 %s898, 4
          %s902 = int_to_ptr.hbm [resolvable:$true] %s901
          %907 = dma.vmem_to_hbm [thread:$0]  %s900, 9216, %s902, %s885, 2304, 2304, 144
        $region40: #{tpu_custom_call.1} parent=27 // pred_fallthru
          _
      $region28: #{tpu_custom_call.1} parent=5 // pred_fallthru
        _
      %p908 = scmp.le.s32.totalorder 2, %s15
      // Predicated region
      $region41: #{tpu_custom_call.1} parent=5 // pred_check
        %p909 = pneg %p908
      $region42: #{tpu_custom_call.1} parent=5 // pred_check_branch
        %911 = sbr.rel (%p909) target = $region44
      $region43: #{tpu_custom_call.1} parent=5 // pred_region
        %s912 = ssub.s32 %s15, 2
        // Predicated region
        $region45: #{tpu_custom_call.1} parent=43 // pred_check
          %p913 = pneg %p107
        $region46: #{tpu_custom_call.1} parent=43 // pred_check_branch
          %915 = sbr.rel (%p913) target = $region48
        $region47: #{tpu_custom_call.1} parent=43 // pred_region
          %s916 = sand.u32 %s92, 1
          %s917 = scalar_lea.sflag [#allocation4], %s916
          %s918 = sand.u32 %s92, 1
          %s919 = smul.addr %s918, 576
          %s920 = scalar_lea.vmem [#allocation7], %s919
          %922 = dma.done %s917, 9216
        $region48: #{tpu_custom_call.1} parent=43 // pred_fallthru
          _
      $region44: #{tpu_custom_call.1} parent=5 // pred_fallthru
        _
    $region6: #{tpu_custom_call.1} parent=1 // loop_footer
      %s19 = sadd.s32 1, %s15
    $region7: #{tpu_custom_call.1} parent=1 // loop_footer_branch
      %14 = sbr.rel target = $region3
    $region8: #{tpu_custom_call.1} parent=1 // loop_exit
      _
    %923 = vsyncpa [#allocation3], 1
    %s924 = scalar_lea.sflag [#allocation3], 1
    %925 = vsyncpa %s924, 1
    %926 = vsyncpa [#allocation6], 1
    %927 = vsyncpa [#allocation4], 1
    %s928 = scalar_lea.sflag [#allocation4], 1
    %929 = vsyncpa %s928, 1

</llo_original>
